<compile_context>
chip_gen: v7x
topology: tpu7x:2x2x1
jax: 0.10.0
libtpu: 0.0.40
codegen_flags: <defaults>
</compile_context>

<pallas_src>
import jax
import jax.numpy as jnp
from jax.experimental import pallas as pl
from jax.experimental.pallas import tpu as pltpu

IN_FEATURES = 5
OUT_FEATURES = 5
PAD_OUT = 128          # lane-dense output width (last-dim multiple of 128)
TB_MAX = 512           # batch tile (rows) for the large-batch grid path


def _linear_kernel(x_ref, w_ref, b_ref, o_ref):
    # x_ref : (tb, IN)        f32
    # w_ref : (IN, PAD_OUT)   f32   (weight pre-transposed + zero-padded outside)
    # b_ref : (1, PAD_OUT)    f32   (bias zero-padded; resident across grid steps)
    # o_ref : (tb, PAD_OUT)   f32   (lane-dense -> unmasked stores)
    acc = jnp.dot(x_ref[...], w_ref[...], preferred_element_type=jnp.float32)
    o_ref[...] = (acc + b_ref[...]).astype(o_ref.dtype)


def prepare_params(weight, bias):
    """One-time layout prep (do at init, not per call).

    PyTorch weight (OUT, IN) -> transposed to (IN, OUT) and zero-padded to
    (IN, PAD_OUT); bias (OUT,) -> (1, PAD_OUT).
    """
    w_t = jnp.asarray(weight, jnp.float32).T                      # (IN, OUT)
    w_pad = jnp.zeros((IN_FEATURES, PAD_OUT), jnp.float32).at[:, :OUT_FEATURES].set(w_t)
    b_pad = jnp.zeros((1, PAD_OUT), jnp.float32).at[0, :OUT_FEATURES].set(
        jnp.asarray(bias, jnp.float32))
    return w_pad, b_pad


def torch_model_forward(x, w_pad, b_pad):
    """Pallas implementation of TorchModel.forward.

    Args:
      x:     (batch, 5) or (5,) input.
      w_pad: (5, 128) padded/transposed weight from prepare_params().
      b_pad: (1, 128) padded bias from prepare_params().
    """
    if x.ndim == 1:
        x = x[None, :]                      # torch unsqueeze(0)
    x = x.astype(jnp.float32)
    batch = x.shape[0]

    if batch <= TB_MAX:
        # Single block covering the whole (tiny) problem: block shape == array shape.
        tb = batch
        padded_b = batch
    else:
        # Large-batch path: 512-row tiles, grid parallel over batch.
        tb = TB_MAX
        padded_b = -(-batch // tb) * tb
        if padded_b != batch:
            x = jnp.pad(x, ((0, padded_b - batch), (0, 0)))

    grid = (padded_b // tb,)

    cost = pl.CostEstimate(
        flops=2 * batch * IN_FEATURES * OUT_FEATURES,
        transcendentals=0,
        bytes_accessed=4 * (padded_b * IN_FEATURES
                            + IN_FEATURES * PAD_OUT
                            + PAD_OUT
                            + padded_b * PAD_OUT),
    )

    out = pl.pallas_call(
        _linear_kernel,
        out_shape=jax.ShapeDtypeStruct((padded_b, PAD_OUT), jnp.float32),
        grid=grid,
        in_specs=[
            pl.BlockSpec((tb, IN_FEATURES), lambda i: (i, 0)),     # x: tiled over batch
            pl.BlockSpec((IN_FEATURES, PAD_OUT), lambda i: (0, 0)),  # weight: resident
            pl.BlockSpec((1, PAD_OUT), lambda i: (0, 0)),            # bias: resident
        ],
        out_specs=pl.BlockSpec((tb, PAD_OUT), lambda i: (i, 0)),
        compiler_params=pltpu.CompilerParams(
            dimension_semantics=("parallel",)),
        cost_estimate=cost,
    )(x, w_pad, b_pad)

    # Slice away batch padding and the lane padding of the output.
    return out[:batch, :OUT_FEATURES]
    # TODO(synk): when this linear sits inside a larger model, fuse it into the
    # adjacent Pallas kernel (or leave it to XLA fusion) — standalone it is pure
    # launch-overhead at (2, 5).


def init_params(key):
    """Deterministic init mimicking torch.nn.Linear default (U(-k, k), k = 1/sqrt(fan_in))."""
    kw, kb = jax.random.split(key)
    bound = 1.0 / jnp.sqrt(jnp.float32(IN_FEATURES))
    weight = jax.random.uniform(
        kw, (OUT_FEATURES, IN_FEATURES), jnp.float32, -bound, bound
    )  # PyTorch layout (OUT, IN)
    bias = jax.random.uniform(kb, (OUT_FEATURES,), jnp.float32, -bound, bound)
    return weight, bias


if __name__ == "__main__":
    key = jax.random.PRNGKey(0)
    k_params, k_x = jax.random.split(key)
    weight, bias = init_params(k_params)          # (OUT, IN), (OUT,)
    w_pad, b_pad = prepare_params(weight, bias)   # one-time transpose + pad

    # Small batch consistent with Linear(5, 5): (batch=2, features=5)
    x = jax.random.normal(k_x, (2, IN_FEATURES), jnp.float32)

    y = torch_model_forward(x, w_pad, b_pad)
    jax.block_until_ready(y)

    # Reference check against plain JAX (PyTorch convention: y = x @ W.T + b)
    y_ref = x @ weight.T + bias
    assert y.shape == (2, OUT_FEATURES)
    assert jnp.allclose(y, y_ref, atol=1e-5), (y, y_ref)

    # Also exercise the 1-D input path (unsqueeze branch)
    y1 = torch_model_forward(x[0], w_pad, b_pad)
    jax.block_until_ready(y1)
    assert y1.shape == (1, OUT_FEATURES)
    assert jnp.allclose(y1[0], y_ref[0], atol=1e-5)

    print("KERNEL_OK")
</pallas_src>

<mosaic_0001>
module attributes {stable_mosaic.version = 11 : i64} {
  func.func @_linear_kernel(%arg0: i32, %arg1: memref<2x5xf32, #tpu.memory_space<vmem>>, %arg2: memref<5x128xf32, #tpu.memory_space<vmem>>, %arg3: memref<1x128xf32, #tpu.memory_space<vmem>>, %arg4: memref<2x128xf32, #tpu.memory_space<vmem>>) attributes {dimension_semantics = [#tpu.dimension_semantics<parallel>], iteration_bounds = array<i64: 1>, scalar_prefetch = 0 : i64, scratch_operands = 0 : i64, tpu.core_type = #tpu.core_type<tc>, window_params = [{transform_indices = @transform_0, window_bounds = array<i64: 2, 5>}, {pipeline_mode = #tpu.pipeline_mode<synchronous>, transform_indices = @transform_1, window_bounds = array<i64: 5, 128>}, {pipeline_mode = #tpu.pipeline_mode<synchronous>, transform_indices = @transform_2, window_bounds = array<i64: 1, 128>}, {transform_indices = @transform_3, window_bounds = array<i64: 2, 128>}]} {
    %c0 = arith.constant 0 : index
    %c0_0 = arith.constant 0 : index
    %0 = vector.load %arg1[%c0, %c0_0] : memref<2x5xf32, #tpu.memory_space<vmem>>, vector<2x5xf32>
    %c0_1 = arith.constant 0 : index
    %c0_2 = arith.constant 0 : index
    %1 = vector.load %arg2[%c0_1, %c0_2] : memref<5x128xf32, #tpu.memory_space<vmem>>, vector<5x128xf32>
    %cst = arith.constant dense<0.000000e+00> : vector<2x128xf32>
    %2 = tpu.matmul %0, %1, %cst {dimension_numbers = #tpu.dot_dimension_numbers<[1], [0], [0], [1], [0, 0, 1, 1], [], []>} : vector<2x5xf32>, vector<5x128xf32>, vector<2x128xf32> -> vector<2x128xf32>
    %c0_3 = arith.constant 0 : index
    %c0_4 = arith.constant 0 : index
    %3 = vector.load %arg3[%c0_3, %c0_4] : memref<1x128xf32, #tpu.memory_space<vmem>>, vector<1x128xf32>
    %4 = vector.broadcast %3 : vector<1x128xf32> to vector<2x128xf32>
    %5 = arith.addf %2, %4 : vector<2x128xf32>
    %c0_5 = arith.constant 0 : index
    %c0_6 = arith.constant 0 : index
    %6 = vector.load %arg4[%c0_5, %c0_6] : memref<2x128xf32, #tpu.memory_space<vmem>>, vector<2x128xf32>
    tpu.vector_store %arg4[%c0_5, %c0_6], %5 {strides = array<i32>} : memref<2x128xf32, #tpu.memory_space<vmem>>, vector<2x128xf32>,
    return
  }
  func.func @transform_0(%arg0: i32) -> (i32, i32) {
    %c0_i32 = arith.constant 0 : i32
    %c0_i32_0 = arith.constant 0 : i32
    return %arg0, %c0_i32 : i32, i32
  }
  func.func @transform_1(%arg0: i32) -> (i32, i32) {
    %c0_i32 = arith.constant 0 : i32
    %c0_i32_0 = arith.constant 0 : i32
    %c0_i32_1 = arith.constant 0 : i32
    return %c0_i32, %c0_i32_0 : i32, i32
  }
  func.func @transform_2(%arg0: i32) -> (i32, i32) {
    %c0_i32 = arith.constant 0 : i32
    %c0_i32_0 = arith.constant 0 : i32
    %c0_i32_1 = arith.constant 0 : i32
    return %c0_i32, %c0_i32_0 : i32, i32
  }
  func.func @transform_3(%arg0: i32) -> (i32, i32) {
    %c0_i32 = arith.constant 0 : i32
    %c0_i32_0 = arith.constant 0 : i32
    return %arg0, %c0_i32 : i32, i32
  }
}

</mosaic_0001>

<llo_original>
// kernel: tpu_custom_call.1
$region0: #{tpu_custom_call.1}
  #allocation0 [shape = 'u32[]', space=smem, size = 0x4, offset = 0x4, fixed_abs, tag = 'smem constant byte address 0x4 - core index']
  #allocation1 [shape = 'u32[144,128]{1,0:T(1,128)}', space=vmem, size = 0x12000, scoped, tag = 'internal scratch']
  %s0 = inlined_call_operand.hbm [shape: f32[2,5], index: 0, kind: input, shape index: {}]
  %s1 = inlined_call_operand.hbm [shape: f32[5,128], index: 1, kind: input, shape index: {}]
  %s2 = inlined_call_operand.vmem [shape: f32[1,128], index: 2, kind: input, shape index: {}]
  %s3 = inlined_call_operand.hbm [shape: f32[2,128], index: 3, kind: output, shape index: {}]
  %s4 = sld [smem:[#allocation0]]
  $region30: #{tpu_custom_call.1} parent=0
    _
  %s6 = ssub.s32 1, %s4
  %s7 = scalar_select 0, %s6, %s4
  $region1: #{tpu_custom_call.1} parent=0
    #allocation2 [shape = 'u8[1024]{0}', space=vmem, size = 0x400, scoped, tag = 'input window, operand 0, single buffered']
    #allocation3 [shape = 's32[1]{0}', space=sflag, size = 0x4, scoped, tag = 'scoped memory for tpu_custom_call.1']
    #allocation4 [shape = 's32[1]{0}', space=sflag, size = 0x4, scoped, tag = 'scoped memory for tpu_custom_call.1']
    #allocation5 [shape = 'u8[4096]{0}', space=vmem, size = 0x1000, scoped, tag = 'input window, operand 1, single buffered']
    #allocation6 [shape = 's32[1]{0}', space=sflag, size = 0x4, scoped, tag = 'scoped memory for tpu_custom_call.1']
    #allocation7 [shape = 'u8[1024]{0}', space=vmem, size = 0x400, scoped, tag = 'output window, operand 0, single buffered']
    %8 = vsyncpa [#allocation3], 0
    %9 = vsyncpa [#allocation6], 0
    %10 = vsyncpa [#allocation4], 0
    // Predicated region
    $region2: #{tpu_custom_call.1} parent=1 // pred_check
      _
    $region3: #{tpu_custom_call.1} parent=1 // pred_check_branch
      %12 = sbr.rel (0) target = $region5
    $region4: #{tpu_custom_call.1} parent=1 // pred_region
      %s14 = ssub.s32 32, 32
      %15 = vsyncadd [#allocation3], %s14
      %s17 = sshll.u32 [#allocation2], 4
      %s18 = int_to_ptr.vmem [resolvable:$true] %s17
      %20 = dma.hbm_to_vmem [thread:$0]  %s0, 32, %s18, [#allocation3]
    $region5: #{tpu_custom_call.1} parent=1 // pred_fallthru
      _
    // Predicated region
    $region6: #{tpu_custom_call.1} parent=1 // pred_check
      _
    $region7: #{tpu_custom_call.1} parent=1 // pred_check_branch
      %22 = sbr.rel (0) target = $region9
    $region8: #{tpu_custom_call.1} parent=1 // pred_region
      %s24 = ssub.s32 128, 128
      %25 = vsyncadd [#allocation6], %s24
      %s27 = sshll.u32 [#allocation5], 4
      %s28 = int_to_ptr.vmem [resolvable:$true] %s27
      %30 = dma.hbm_to_vmem [thread:$0]  %s1, 128, %s28, [#allocation6]
    $region9: #{tpu_custom_call.1} parent=1 // pred_fallthru
      _
    // Predicated region
    $region10: #{tpu_custom_call.1} parent=1 // pred_check
      _
    $region11: #{tpu_custom_call.1} parent=1 // pred_check_branch
      %32 = sbr.rel (0) target = $region13
    $region12: #{tpu_custom_call.1} parent=1 // pred_region
      _
    $region13: #{tpu_custom_call.1} parent=1 // pred_fallthru
      _
    // Predicated region
    $region14: #{tpu_custom_call.1} parent=1 // pred_check
      _
    $region15: #{tpu_custom_call.1} parent=1 // pred_check_branch
      %34 = sbr.rel (0) target = $region17
    $region16: #{tpu_custom_call.1} parent=1 // pred_region
      %35 = dma.done [#allocation3], 32
    $region17: #{tpu_custom_call.1} parent=1 // pred_fallthru
      _
    // Predicated region
    $region18: #{tpu_custom_call.1} parent=1 // pred_check
      _
    $region19: #{tpu_custom_call.1} parent=1 // pred_check_branch
      %37 = sbr.rel (0) target = $region21
    $region20: #{tpu_custom_call.1} parent=1 // pred_region
      %38 = dma.done [#allocation6], 128
    $region21: #{tpu_custom_call.1} parent=1 // pred_fallthru
      _
    %v39 = vld [vmem:[#allocation2] sm:$0x3]
    %v40 = vld [vmem:[#allocation5] sm:$0x1f]
    %v41 = vld [vmem:[%s2] sm:$0x1]
    %v43 = vlaneseq
    %v44 = vshrl.u32 %v43, 7
    %v45 = vsub.s32 0, %v44
    %v46 = vrot.slane %v41, %v45
    %vm48 = vcmask 39936
    %v50 = vsel %vm48, %v39, 0
    %vm52 = vcmask 1044480
    %v54 = vsel %vm52, %v40, 0
    %56 = vmatprep.subr.mxu0 0.0
    %57 = vmatpush1.msra.mxu0 %v54
    %58 = vmatprep.subr.mxu0 0.0
    %59 = vmatpush1.msra.mxu0 0.0
    %60 = vmatprep.subr.mxu0 0.0
    %61 = vmatpush1.msra.mxu0 0.0
    %62 = vmatprep.subr.mxu0 0.0
    %63 = vmatpush1.msra.mxu0 0.0
    %64 = vmatprep.subr.mxu0 0.0
    %65 = vmatpush1.msra.mxu0 0.0
    %66 = vmatprep.subr.mxu0 0.0
    %67 = vmatpush1.msra.mxu0 0.0
    %68 = vmatprep.subr.mxu0 0.0
    %69 = vmatpush1.msra.mxu0 0.0
    %70 = vmatprep.subr.mxu0 0.0
    %71 = vmatpush1.msra.mxu0 0.0
    %72 = vmatprep.subr.mxu0 0.0
    %73 = vmatpush1.msra.mxu0 0.0
    %74 = vmatprep.subr.mxu0 0.0
    %75 = vmatpush1.msra.mxu0 0.0
    %76 = vmatprep.subr.mxu0 0.0
    %77 = vmatpush1.msra.mxu0 0.0
    %78 = vmatprep.subr.mxu0 0.0
    %79 = vmatpush1.msra.mxu0 0.0
    %80 = vmatprep.subr.mxu0 0.0
    %81 = vmatpush1.msra.mxu0 0.0
    %82 = vmatprep.subr.mxu0 0.0
    %83 = vmatpush1.msra.mxu0 0.0
    %84 = vmatprep.subr.mxu0 0.0
    %85 = vmatpush1.msra.mxu0 0.0
    %86 = vmatprep.subr.mxu0 0.0
    %87 = vmatpush1.msra.mxu0 0.0
    %88 = vmatprep.subr.mxu0 0.0
    %89 = vmatpush1.msra.mxu0 0.0
    %90 = vmatprep.subr.mxu0 0.0
    %91 = vmatpush1.msra.mxu0 0.0
    %92 = vmatprep.subr.mxu0 0.0
    %93 = vmatpush1.msra.mxu0 0.0
    %94 = vmatprep.subr.mxu0 0.0
    %95 = vmatpush1.msra.mxu0 0.0
    %96 = vmatprep.subr.mxu0 0.0
    %97 = vmatpush1.msra.mxu0 0.0
    %98 = vmatprep.subr.mxu0 0.0
    %99 = vmatpush1.msra.mxu0 0.0
    %100 = vmatprep.subr.mxu0 0.0
    %101 = vmatpush1.msra.mxu0 0.0
    %102 = vmatprep.subr.mxu0 0.0
    %103 = vmatpush1.msra.mxu0 0.0
    %104 = vmatprep.subr.mxu0 0.0
    %105 = vmatpush1.msra.mxu0 0.0
    %106 = vmatprep.subr.mxu0 0.0
    %107 = vmatpush1.msra.mxu0 0.0
    %108 = vmatprep.subr.mxu0 0.0
    %109 = vmatpush1.msra.mxu0 0.0
    %110 = vmatprep.subr.mxu0 0.0
    %111 = vmatpush1.msra.mxu0 0.0
    %112 = vmatprep.subr.mxu0 0.0
    %113 = vmatpush1.msra.mxu0 0.0
    %114 = vmatprep.subr.mxu0 0.0
    %115 = vmatpush1.msra.mxu0 0.0
    %116 = vmatprep.subr.mxu0 0.0
    %117 = vmatpush1.msra.mxu0 0.0
    %118 = vmatprep.subr.mxu0 0.0
    %119 = vmatpush1.msra.mxu0 0.0
    %120 = vmatprep.mubr.f32.mxu0 0.0
    %121 = vmatmul.mubr.f32.gmra.mrb[0].mxu0 %v50
    %v122 = vpop.f32.mrb[0].mxu0
    %v123 = vadd.f32 %v46, %v122
    %v124 = vpop.f32.mrb[0].mxu0
    %125 = vdwg.mxu0
    %126 = vst [vmem:[#allocation7] sm:$0x3] %v123
    // Predicated region
    $region22: #{tpu_custom_call.1} parent=1 // pred_check
      _
    $region23: #{tpu_custom_call.1} parent=1 // pred_check_branch
      %128 = sbr.rel (0) target = $region25
    $region24: #{tpu_custom_call.1} parent=1 // pred_region
      %s130 = ssub.s32 32, 32
      %131 = vsyncadd [#allocation4], %s130
      %s133 = sshll.u32 [#allocation7], 4
      %s134 = int_to_ptr.vmem [resolvable:$true] %s133
      %136 = dma.vmem_to_hbm [thread:$0]  %s134, 32, %s3, [#allocation4]
    $region25: #{tpu_custom_call.1} parent=1 // pred_fallthru
      _
    // Predicated region
    $region26: #{tpu_custom_call.1} parent=1 // pred_check
      _
    $region27: #{tpu_custom_call.1} parent=1 // pred_check_branch
      %138 = sbr.rel (0) target = $region29
    $region28: #{tpu_custom_call.1} parent=1 // pred_region
      %139 = dma.done [#allocation4], 32
    $region29: #{tpu_custom_call.1} parent=1 // pred_fallthru
      _
    %140 = vsyncpa [#allocation3], 1
    %141 = vsyncpa [#allocation6], 1
    %142 = vsyncpa [#allocation4], 1

</llo_original>
